<compile_context>
chip_gen: v7x
topology: tpu7x:2x2x1
jax: 0.10.0
libtpu: 0.0.40
codegen_flags: <defaults>
</compile_context>

<pallas_src>
import jax
import jax.numpy as jnp
from jax.experimental import pallas as pl
from jax.experimental.pallas import tpu as pltpu

IN_DIM = 4
HID_DIM = 256
OUT_DIM = 2
OUT_PAD = 128          # lane-dense padded fc2 output width
MAX_BATCH_TILE = 512   # rows per grid step once the batch is large


def _round_up(n, m):
    return ((n + m - 1) // m) * m


def qnet_kernel(x_ref, w1_ref, b1_ref, w2_ref, b2_ref, o_ref):
    # fc1 (K=4): unrolled VPU broadcast-FMAs instead of a <4%-utilized MXU matmul.
    x = x_ref[...]                                   # (bm, 4) f32
    w1 = w1_ref[...]                                 # (4, 256) f32
    h = x[:, 0:1] * w1[0:1, :]
    h = h + x[:, 1:2] * w1[1:2, :]
    h = h + x[:, 2:3] * w1[2:3, :]
    h = h + x[:, 3:4] * w1[3:4, :]
    h = jnp.maximum(h + b1_ref[...], 0.0)            # bias + ReLU, (bm, 256)

    # fc2: MXU matmul with a lane-dense, zero-padded 128-wide output tile.
    out = jnp.dot(h, w2_ref[...], preferred_element_type=jnp.float32)
    o_ref[...] = (out + b2_ref[...]).astype(o_ref.dtype)   # (bm, 128)


def qnet_forward(x, w1, b1, w2, b2):
    B, in_dim = x.shape
    assert in_dim == IN_DIM and w1.shape == (IN_DIM, HID_DIM)
    out_dim = w2.shape[1]

    # Lane-dense fc2: zero-pad to 128 output columns (padded columns are exactly
    # zero so they cannot leak into the sliced result).
    w2_pad = jnp.zeros((HID_DIM, OUT_PAD), jnp.float32).at[:, :out_dim].set(w2)
    b2_pad = jnp.zeros((1, OUT_PAD), jnp.float32).at[:, :out_dim].set(b2)

    # Batch tiling: rows tiled by up to MAX_BATCH_TILE; weights/biases are loaded
    # once and stay VMEM-resident across the whole grid (index_map -> (0, 0)).
    block_bm = MAX_BATCH_TILE if B >= MAX_BATCH_TILE else _round_up(B, 8)
    B_pad = _round_up(B, block_bm)
    x_pad = x if B_pad == B else jnp.pad(x, ((0, B_pad - B), (0, 0)))
    grid = (B_pad // block_bm,)

    vmem = pltpu.MemorySpace.VMEM
    flops = 2 * B_pad * (IN_DIM * HID_DIM + HID_DIM * OUT_PAD)
    bytes_accessed = 4 * (x_pad.size + w1.size + b1.size + w2_pad.size
                          + b2_pad.size + B_pad * OUT_PAD)

    out = pl.pallas_call(
        qnet_kernel,
        out_shape=jax.ShapeDtypeStruct((B_pad, OUT_PAD), jnp.float32),
        grid=grid,
        in_specs=[
            pl.BlockSpec((block_bm, IN_DIM), lambda i: (i, 0), memory_space=vmem),
            pl.BlockSpec((IN_DIM, HID_DIM), lambda i: (0, 0), memory_space=vmem),
            pl.BlockSpec((1, HID_DIM), lambda i: (0, 0), memory_space=vmem),
            pl.BlockSpec((HID_DIM, OUT_PAD), lambda i: (0, 0), memory_space=vmem),
            pl.BlockSpec((1, OUT_PAD), lambda i: (0, 0), memory_space=vmem),
        ],
        out_specs=pl.BlockSpec((block_bm, OUT_PAD), lambda i: (i, 0),
                               memory_space=vmem),
        compiler_params=pltpu.CompilerParams(
            dimension_semantics=("parallel",)),
        cost_estimate=pl.CostEstimate(flops=flops, transcendentals=0,
                                      bytes_accessed=bytes_accessed),
    )(x_pad, w1, b1, w2_pad, b2_pad)

    return out[:B, :out_dim]


def init_params(key):
    # Deterministic synthetic init mimicking torch.nn.Linear default
    # (uniform in [-1/sqrt(fan_in), 1/sqrt(fan_in)]).
    k1, k2, k3, k4 = jax.random.split(key, 4)
    bound1 = 1.0 / jnp.sqrt(IN_DIM)
    bound2 = 1.0 / jnp.sqrt(HID_DIM)
    w1 = jax.random.uniform(k1, (IN_DIM, HID_DIM), jnp.float32, -bound1, bound1)
    b1 = jax.random.uniform(k2, (1, HID_DIM), jnp.float32, -bound1, bound1)
    w2 = jax.random.uniform(k3, (HID_DIM, OUT_DIM), jnp.float32, -bound2, bound2)
    b2 = jax.random.uniform(k4, (1, OUT_DIM), jnp.float32, -bound2, bound2)
    return w1, b1, w2, b2


if __name__ == "__main__":
    key = jax.random.PRNGKey(0)
    kx, kp = jax.random.split(key)
    w1, b1, w2, b2 = init_params(kp)

    # Small CartPole-like batch (8 obs, 4 features each).
    batch = 8
    x = jax.random.normal(kx, (batch, IN_DIM), jnp.float32)
    out = jax.block_until_ready(qnet_forward(x, w1, b1, w2, b2))
    ref = jnp.maximum(x @ w1 + b1, 0.0) @ w2 + b2
    assert out.shape == (batch, OUT_DIM)
    assert jnp.allclose(out, ref, atol=1e-5, rtol=1e-5)

    # Larger, non-multiple batch exercises the multi-step batch grid + padding.
    big_x = jax.random.normal(kx, (1030, IN_DIM), jnp.float32)
    big_out = jax.block_until_ready(qnet_forward(big_x, w1, b1, w2, b2))
    big_ref = jnp.maximum(big_x @ w1 + b1, 0.0) @ w2 + b2
    assert big_out.shape == (1030, OUT_DIM)
    assert jnp.allclose(big_out, big_ref, atol=1e-4, rtol=1e-4)

    # TODO(synk): sample_action's host-side epsilon-greedy (random.random /
    # argmax-to-int) is Python control flow, not part of the kernel forward.
    print("KERNEL_OK")
</pallas_src>

<mosaic_0001>
module attributes {stable_mosaic.version = 11 : i64} {
  func.func @qnet_kernel(%arg0: i32, %arg1: memref<8x4xf32, #tpu.memory_space<vmem>>, %arg2: memref<4x256xf32, #tpu.memory_space<vmem>>, %arg3: memref<1x256xf32, #tpu.memory_space<vmem>>, %arg4: memref<256x128xf32, #tpu.memory_space<vmem>>, %arg5: memref<1x128xf32, #tpu.memory_space<vmem>>, %arg6: memref<8x128xf32, #tpu.memory_space<vmem>>) attributes {dimension_semantics = [#tpu.dimension_semantics<parallel>], iteration_bounds = array<i64: 1>, scalar_prefetch = 0 : i64, scratch_operands = 0 : i64, tpu.core_type = #tpu.core_type<tc>, window_params = [{transform_indices = @transform_0, window_bounds = array<i64: 8, 4>}, {pipeline_mode = #tpu.pipeline_mode<synchronous>, transform_indices = @transform_1, window_bounds = array<i64: 4, 256>}, {pipeline_mode = #tpu.pipeline_mode<synchronous>, transform_indices = @transform_2, window_bounds = array<i64: 1, 256>}, {pipeline_mode = #tpu.pipeline_mode<synchronous>, transform_indices = @transform_3, window_bounds = array<i64: 256, 128>}, {pipeline_mode = #tpu.pipeline_mode<synchronous>, transform_indices = @transform_4, window_bounds = array<i64: 1, 128>}, {transform_indices = @transform_5, window_bounds = array<i64: 8, 128>}]} {
    %c0 = arith.constant 0 : index
    %c0_0 = arith.constant 0 : index
    %0 = vector.load %arg1[%c0, %c0_0] : memref<8x4xf32, #tpu.memory_space<vmem>>, vector<8x4xf32>
    %c0_1 = arith.constant 0 : index
    %c0_2 = arith.constant 0 : index
    %1 = vector.load %arg2[%c0_1, %c0_2] : memref<4x256xf32, #tpu.memory_space<vmem>>, vector<4x256xf32>
    %2 = vector.extract_strided_slice %0 {offsets = [0, 0], sizes = [8, 1], strides = [1, 1]} : vector<8x4xf32> to vector<8x1xf32>
    %3 = vector.extract_strided_slice %1 {offsets = [0, 0], sizes = [1, 256], strides = [1, 1]} : vector<4x256xf32> to vector<1x256xf32>
    %4 = vector.broadcast %2 : vector<8x1xf32> to vector<8x256xf32>
    %5 = vector.broadcast %3 : vector<1x256xf32> to vector<8x256xf32>
    %6 = arith.mulf %4, %5 : vector<8x256xf32>
    %7 = vector.extract_strided_slice %0 {offsets = [0, 1], sizes = [8, 1], strides = [1, 1]} : vector<8x4xf32> to vector<8x1xf32>
    %8 = vector.extract_strided_slice %1 {offsets = [1, 0], sizes = [1, 256], strides = [1, 1]} : vector<4x256xf32> to vector<1x256xf32>
    %9 = vector.broadcast %7 : vector<8x1xf32> to vector<8x256xf32>
    %10 = vector.broadcast %8 : vector<1x256xf32> to vector<8x256xf32>
    %11 = arith.mulf %9, %10 : vector<8x256xf32>
    %12 = arith.addf %6, %11 : vector<8x256xf32>
    %13 = vector.extract_strided_slice %0 {offsets = [0, 2], sizes = [8, 1], strides = [1, 1]} : vector<8x4xf32> to vector<8x1xf32>
    %14 = vector.extract_strided_slice %1 {offsets = [2, 0], sizes = [1, 256], strides = [1, 1]} : vector<4x256xf32> to vector<1x256xf32>
    %15 = vector.broadcast %13 : vector<8x1xf32> to vector<8x256xf32>
    %16 = vector.broadcast %14 : vector<1x256xf32> to vector<8x256xf32>
    %17 = arith.mulf %15, %16 : vector<8x256xf32>
    %18 = arith.addf %12, %17 : vector<8x256xf32>
    %19 = vector.extract_strided_slice %0 {offsets = [0, 3], sizes = [8, 1], strides = [1, 1]} : vector<8x4xf32> to vector<8x1xf32>
    %20 = vector.extract_strided_slice %1 {offsets = [3, 0], sizes = [1, 256], strides = [1, 1]} : vector<4x256xf32> to vector<1x256xf32>
    %21 = vector.broadcast %19 : vector<8x1xf32> to vector<8x256xf32>
    %22 = vector.broadcast %20 : vector<1x256xf32> to vector<8x256xf32>
    %23 = arith.mulf %21, %22 : vector<8x256xf32>
    %24 = arith.addf %18, %23 : vector<8x256xf32>
    %c0_3 = arith.constant 0 : index
    %c0_4 = arith.constant 0 : index
    %25 = vector.load %arg3[%c0_3, %c0_4] : memref<1x256xf32, #tpu.memory_space<vmem>>, vector<1x256xf32>
    %26 = vector.broadcast %25 : vector<1x256xf32> to vector<8x256xf32>
    %27 = arith.addf %24, %26 : vector<8x256xf32>
    %cst = arith.constant 0.000000e+00 : f32
    %28 = vector.broadcast %cst : f32 to vector<8x256xf32>
    %29 = arith.maximumf %27, %28 : vector<8x256xf32>
    %c0_5 = arith.constant 0 : index
    %c0_6 = arith.constant 0 : index
    %30 = vector.load %arg4[%c0_5, %c0_6] : memref<256x128xf32, #tpu.memory_space<vmem>>, vector<256x128xf32>
    %cst_7 = arith.constant dense<0.000000e+00> : vector<8x128xf32>
    %31 = tpu.matmul %29, %30, %cst_7 {dimension_numbers = #tpu.dot_dimension_numbers<[1], [0], [0], [1], [0, 0, 1, 1], [], []>} : vector<8x256xf32>, vector<256x128xf32>, vector<8x128xf32> -> vector<8x128xf32>
    %c0_8 = arith.constant 0 : index
    %c0_9 = arith.constant 0 : index
    %32 = vector.load %arg5[%c0_8, %c0_9] : memref<1x128xf32, #tpu.memory_space<vmem>>, vector<1x128xf32>
    %33 = vector.broadcast %32 : vector<1x128xf32> to vector<8x128xf32>
    %34 = arith.addf %31, %33 : vector<8x128xf32>
    %c0_10 = arith.constant 0 : index
    %c0_11 = arith.constant 0 : index
    %35 = vector.load %arg6[%c0_10, %c0_11] : memref<8x128xf32, #tpu.memory_space<vmem>>, vector<8x128xf32>
    tpu.vector_store %arg6[%c0_10, %c0_11], %34 {strides = array<i32>} : memref<8x128xf32, #tpu.memory_space<vmem>>, vector<8x128xf32>,
    return
  }
  func.func @transform_0(%arg0: i32) -> (i32, i32) {
    %c0_i32 = arith.constant 0 : i32
    %c0_i32_0 = arith.constant 0 : i32
    return %arg0, %c0_i32 : i32, i32
  }
  func.func @transform_1(%arg0: i32) -> (i32, i32) {
    %c0_i32 = arith.constant 0 : i32
    %c0_i32_0 = arith.constant 0 : i32
    %c0_i32_1 = arith.constant 0 : i32
    return %c0_i32, %c0_i32_0 : i32, i32
  }
  func.func @transform_2(%arg0: i32) -> (i32, i32) {
    %c0_i32 = arith.constant 0 : i32
    %c0_i32_0 = arith.constant 0 : i32
    %c0_i32_1 = arith.constant 0 : i32
    return %c0_i32, %c0_i32_0 : i32, i32
  }
  func.func @transform_3(%arg0: i32) -> (i32, i32) {
    %c0_i32 = arith.constant 0 : i32
    %c0_i32_0 = arith.constant 0 : i32
    %c0_i32_1 = arith.constant 0 : i32
    return %c0_i32, %c0_i32_0 : i32, i32
  }
  func.func @transform_4(%arg0: i32) -> (i32, i32) {
    %c0_i32 = arith.constant 0 : i32
    %c0_i32_0 = arith.constant 0 : i32
    %c0_i32_1 = arith.constant 0 : i32
    return %c0_i32, %c0_i32_0 : i32, i32
  }
  func.func @transform_5(%arg0: i32) -> (i32, i32) {
    %c0_i32 = arith.constant 0 : i32
    %c0_i32_0 = arith.constant 0 : i32
    return %arg0, %c0_i32 : i32, i32
  }
}

</mosaic_0001>

<llo_original>
// kernel: tpu_custom_call.1
$region0: #{tpu_custom_call.1}
  #allocation0 [shape = 'u32[]', space=smem, size = 0x4, offset = 0x4, fixed_abs, tag = 'smem constant byte address 0x4 - core index']
  #allocation1 [shape = 'u32[144,128]{1,0:T(1,128)}', space=vmem, size = 0x12000, scoped, tag = 'internal scratch']
  %s0 = inlined_call_operand.vmem [shape: f32[8,4], index: 0, kind: input, shape index: {}]
  %s1 = inlined_call_operand.vmem [shape: f32[4,256], index: 1, kind: input, shape index: {}]
  %s2 = inlined_call_operand.vmem [shape: f32[1,256], index: 2, kind: input, shape index: {}]
  %s3 = inlined_call_operand.hbm [shape: f32[256,128], index: 3, kind: input, shape index: {}]
  %s4 = inlined_call_operand.vmem [shape: f32[1,128], index: 4, kind: input, shape index: {}]
  %s5 = inlined_call_operand.hbm [shape: f32[8,128], index: 5, kind: output, shape index: {}]
  %s6 = sld [smem:[#allocation0]]
  $region34: #{tpu_custom_call.1} parent=0
    _
  %s8 = ssub.s32 1, %s6
  %s9 = scalar_select 0, %s8, %s6
  $region1: #{tpu_custom_call.1} parent=0
    #allocation2 [shape = 'u8[131072]{0}', space=vmem, size = 0x20000, scoped, tag = 'input window, operand 3, single buffered']
    #allocation3 [shape = 's32[1]{0}', space=sflag, size = 0x4, scoped, tag = 'scoped memory for tpu_custom_call.1']
    #allocation4 [shape = 's32[1]{0}', space=sflag, size = 0x4, scoped, tag = 'scoped memory for tpu_custom_call.1']
    #allocation5 [shape = 'u8[4096]{0}', space=vmem, size = 0x1000, scoped, tag = 'output window, operand 0, single buffered']
    %10 = vsyncpa [#allocation3], 0
    %11 = vsyncpa [#allocation4], 0
    // Predicated region
    $region2: #{tpu_custom_call.1} parent=1 // pred_check
      _
    $region3: #{tpu_custom_call.1} parent=1 // pred_check_branch
      %13 = sbr.rel (0) target = $region5
    $region4: #{tpu_custom_call.1} parent=1 // pred_region
      _
    $region5: #{tpu_custom_call.1} parent=1 // pred_fallthru
      _
    // Predicated region
    $region6: #{tpu_custom_call.1} parent=1 // pred_check
      _
    $region7: #{tpu_custom_call.1} parent=1 // pred_check_branch
      %15 = sbr.rel (0) target = $region9
    $region8: #{tpu_custom_call.1} parent=1 // pred_region
      _
    $region9: #{tpu_custom_call.1} parent=1 // pred_fallthru
      _
    // Predicated region
    $region10: #{tpu_custom_call.1} parent=1 // pred_check
      _
    $region11: #{tpu_custom_call.1} parent=1 // pred_check_branch
      %17 = sbr.rel (0) target = $region13
    $region12: #{tpu_custom_call.1} parent=1 // pred_region
      _
    $region13: #{tpu_custom_call.1} parent=1 // pred_fallthru
      _
    // Predicated region
    $region14: #{tpu_custom_call.1} parent=1 // pred_check
      _
    $region15: #{tpu_custom_call.1} parent=1 // pred_check_branch
      %19 = sbr.rel (0) target = $region17
    $region16: #{tpu_custom_call.1} parent=1 // pred_region
      %s21 = ssub.s32 4096, 4096
      %22 = vsyncadd [#allocation3], %s21
      %s23 = sshll.u32 [#allocation2], 4
      %s24 = int_to_ptr.vmem [resolvable:$true] %s23
      %29 = dma.hbm_to_vmem [thread:$0]  %s3, 4096, %s24, [#allocation3], 128, 128, 8
    $region17: #{tpu_custom_call.1} parent=1 // pred_fallthru
      _
    // Predicated region
    $region18: #{tpu_custom_call.1} parent=1 // pred_check
      _
    $region19: #{tpu_custom_call.1} parent=1 // pred_check_branch
      %31 = sbr.rel (0) target = $region21
    $region20: #{tpu_custom_call.1} parent=1 // pred_region
      _
    $region21: #{tpu_custom_call.1} parent=1 // pred_fallthru
      _
    // Predicated region
    $region22: #{tpu_custom_call.1} parent=1 // pred_check
      _
    $region23: #{tpu_custom_call.1} parent=1 // pred_check_branch
      %33 = sbr.rel (0) target = $region25
    $region24: #{tpu_custom_call.1} parent=1 // pred_region
      %34 = dma.done [#allocation3], 4096
    $region25: #{tpu_custom_call.1} parent=1 // pred_fallthru
      _
    %v35 = vld [vmem:[%s0] sm:$0xff]
    %v36 = vld [vmem:[%s1] sm:$0xff]
    %38 = vset.pattern.permute.xlu0 0
    %39 = vperm.xlu0 %38, %v35
    %v40 = vpop.permute.xlu0 %39
    %v43 = vlaneseq
    %v44 = vshrl.u32 %v43, 7
    %v45 = vsub.s32 0, %v44
    %v46 = vrot.slane %v36, %v45
    %v47 = vlaneseq
    %v48 = vshrl.u32 %v47, 7
    %v49 = vsub.s32 4, %v48
    %v50 = vrot.slane %v36, %v49
    %v53 = vlaneseq
    %v54 = vshrl.u32 %v53, 7
    %v55 = vsub.s32 0, %v54
    %v56 = vrot.slane %v46, %v55
    %v57 = vlaneseq
    %v58 = vshrl.u32 %v57, 7
    %v59 = vsub.s32 0, %v58
    %v60 = vrot.slane %v50, %v59
    %v61 = vmul.f32 %v40, %v56
    %v62 = vmul.f32 %v40, %v60
    %63 = vset.pattern.permute.xlu0 1
    %64 = vperm.xlu0 %63, %v35
    %v65 = vpop.permute.xlu0 %64
    %v67 = vlaneseq
    %v68 = vshrl.u32 %v67, 7
    %v69 = vsub.s32 1, %v68
    %v70 = vrot.slane %v36, %v69
    %v71 = vlaneseq
    %v72 = vshrl.u32 %v71, 7
    %v73 = vsub.s32 5, %v72
    %v74 = vrot.slane %v36, %v73
    %v77 = vlaneseq
    %v78 = vshrl.u32 %v77, 7
    %v79 = vsub.s32 1, %v78
    %v80 = vrot.slane %v70, %v79
    %v81 = vlaneseq
    %v82 = vshrl.u32 %v81, 7
    %v83 = vsub.s32 1, %v82
    %v84 = vrot.slane %v74, %v83
    %v85 = vmul.f32 %v65, %v80
    %v86 = vmul.f32 %v65, %v84
    %v87 = vadd.f32 %v61, %v85
    %v88 = vadd.f32 %v62, %v86
    %89 = vset.pattern.permute.xlu0 2
    %90 = vperm.xlu0 %89, %v35
    %v91 = vpop.permute.xlu0 %90
    %v93 = vlaneseq
    %v94 = vshrl.u32 %v93, 7
    %v95 = vsub.s32 2, %v94
    %v96 = vrot.slane %v36, %v95
    %v97 = vlaneseq
    %v98 = vshrl.u32 %v97, 7
    %v99 = vsub.s32 6, %v98
    %v100 = vrot.slane %v36, %v99
    %v103 = vlaneseq
    %v104 = vshrl.u32 %v103, 7
    %v105 = vsub.s32 2, %v104
    %v106 = vrot.slane %v96, %v105
    %v107 = vlaneseq
    %v108 = vshrl.u32 %v107, 7
    %v109 = vsub.s32 2, %v108
    %v110 = vrot.slane %v100, %v109
    %v111 = vmul.f32 %v91, %v106
    %v112 = vmul.f32 %v91, %v110
    %v113 = vadd.f32 %v87, %v111
    %v114 = vadd.f32 %v88, %v112
    %115 = vset.pattern.permute.xlu0 3
    %116 = vperm.xlu0 %115, %v35
    %v117 = vpop.permute.xlu0 %116
    %v119 = vlaneseq
    %v120 = vshrl.u32 %v119, 7
    %v121 = vsub.s32 3, %v120
    %v122 = vrot.slane %v36, %v121
    %v123 = vlaneseq
    %v124 = vshrl.u32 %v123, 7
    %v125 = vsub.s32 7, %v124
    %v126 = vrot.slane %v36, %v125
    %v129 = vlaneseq
    %v130 = vshrl.u32 %v129, 7
    %v131 = vsub.s32 3, %v130
    %v132 = vrot.slane %v122, %v131
    %v133 = vlaneseq
    %v134 = vshrl.u32 %v133, 7
    %v135 = vsub.s32 3, %v134
    %v136 = vrot.slane %v126, %v135
    %v137 = vmul.f32 %v117, %v132
    %v138 = vmul.f32 %v117, %v136
    %v139 = vadd.f32 %v113, %v137
    %v140 = vadd.f32 %v114, %v138
    %v141 = vld [vmem:[%s2] sm:$0x3]
    %v143 = vlaneseq
    %v144 = vshrl.u32 %v143, 7
    %v145 = vsub.s32 0, %v144
    %v146 = vrot.slane %v141, %v145
    %v147 = vlaneseq
    %v148 = vshrl.u32 %v147, 7
    %v149 = vsub.s32 1, %v148
    %v150 = vrot.slane %v141, %v149
    %v153 = vadd.f32 %v139, %v146
    %v154 = vadd.f32 %v140, %v150
    %v155 = vmax.f32 %v153, 0.0
    %v156 = vmax.f32 %v154, 0.0
    %v157 = vld [vmem:[#allocation2] sm:$0xff]
    %v158 = vld [vmem:[#allocation2 + $0x8] sm:$0xff]
    %v159 = vld [vmem:[#allocation2 + $0x10] sm:$0xff]
    %v160 = vld [vmem:[#allocation2 + $0x18] sm:$0xff]
    %v161 = vld [vmem:[#allocation2 + $0x20] sm:$0xff]
    %v162 = vld [vmem:[#allocation2 + $0x28] sm:$0xff]
    %v163 = vld [vmem:[#allocation2 + $0x30] sm:$0xff]
    %v164 = vld [vmem:[#allocation2 + $0x38] sm:$0xff]
    %v165 = vld [vmem:[#allocation2 + $0x40] sm:$0xff]
    %v166 = vld [vmem:[#allocation2 + $0x48] sm:$0xff]
    %v167 = vld [vmem:[#allocation2 + $0x50] sm:$0xff]
    %v168 = vld [vmem:[#allocation2 + $0x58] sm:$0xff]
    %v169 = vld [vmem:[#allocation2 + $0x60] sm:$0xff]
    %v170 = vld [vmem:[#allocation2 + $0x68] sm:$0xff]
    %v171 = vld [vmem:[#allocation2 + $0x70] sm:$0xff]
    %v172 = vld [vmem:[#allocation2 + $0x78] sm:$0xff]
    %v173 = vld [vmem:[#allocation2 + $0x80] sm:$0xff]
    %v174 = vld [vmem:[#allocation2 + $0x88] sm:$0xff]
    %v175 = vld [vmem:[#allocation2 + $0x90] sm:$0xff]
    %v176 = vld [vmem:[#allocation2 + $0x98] sm:$0xff]
    %v177 = vld [vmem:[#allocation2 + $0xa0] sm:$0xff]
    %v178 = vld [vmem:[#allocation2 + $0xa8] sm:$0xff]
    %v179 = vld [vmem:[#allocation2 + $0xb0] sm:$0xff]
    %v180 = vld [vmem:[#allocation2 + $0xb8] sm:$0xff]
    %v181 = vld [vmem:[#allocation2 + $0xc0] sm:$0xff]
    %v182 = vld [vmem:[#allocation2 + $0xc8] sm:$0xff]
    %v183 = vld [vmem:[#allocation2 + $0xd0] sm:$0xff]
    %v184 = vld [vmem:[#allocation2 + $0xd8] sm:$0xff]
    %v185 = vld [vmem:[#allocation2 + $0xe0] sm:$0xff]
    %v186 = vld [vmem:[#allocation2 + $0xe8] sm:$0xff]
    %v187 = vld [vmem:[#allocation2 + $0xf0] sm:$0xff]
    %v188 = vld [vmem:[#allocation2 + $0xf8] sm:$0xff]
    %v189 = vld [vmem:[%s4] sm:$0x1]
    %v191 = vlaneseq
    %v192 = vshrl.u32 %v191, 7
    %v193 = vsub.s32 0, %v192
    %v194 = vrot.slane %v189, %v193
    %196 = vmatprep.subr.mxu0 0.0
    %197 = vmatpush1.msra.mxu0 %v157
    %198 = vmatprep.subr.mxu0 0.0
    %199 = vmatpush1.msra.mxu0 %v158
    %200 = vmatprep.subr.mxu0 0.0
    %201 = vmatpush1.msra.mxu0 %v159
    %202 = vmatprep.subr.mxu0 0.0
    %203 = vmatpush1.msra.mxu0 %v160
    %204 = vmatprep.subr.mxu0 0.0
    %205 = vmatpush1.msra.mxu0 %v161
    %206 = vmatprep.subr.mxu0 0.0
    %207 = vmatpush1.msra.mxu0 %v162
    %208 = vmatprep.subr.mxu0 0.0
    %209 = vmatpush1.msra.mxu0 %v163
    %210 = vmatprep.subr.mxu0 0.0
    %211 = vmatpush1.msra.mxu0 %v164
    %212 = vmatprep.subr.mxu0 0.0
    %213 = vmatpush1.msra.mxu0 %v165
    %214 = vmatprep.subr.mxu0 0.0
    %215 = vmatpush1.msra.mxu0 %v166
    %216 = vmatprep.subr.mxu0 0.0
    %217 = vmatpush1.msra.mxu0 %v167
    %218 = vmatprep.subr.mxu0 0.0
    %219 = vmatpush1.msra.mxu0 %v168
    %220 = vmatprep.subr.mxu0 0.0
    %221 = vmatpush1.msra.mxu0 %v169
    %222 = vmatprep.subr.mxu0 0.0
    %223 = vmatpush1.msra.mxu0 %v170
    %224 = vmatprep.subr.mxu0 0.0
    %225 = vmatpush1.msra.mxu0 %v171
    %226 = vmatprep.subr.mxu0 0.0
    %227 = vmatpush1.msra.mxu0 %v172
    %228 = vmatprep.subr.mxu0 0.0
    %229 = vmatpush1.msra.mxu0 %v173
    %230 = vmatprep.subr.mxu0 0.0
    %231 = vmatpush1.msra.mxu0 %v174
    %232 = vmatprep.subr.mxu0 0.0
    %233 = vmatpush1.msra.mxu0 %v175
    %234 = vmatprep.subr.mxu0 0.0
    %235 = vmatpush1.msra.mxu0 %v176
    %236 = vmatprep.subr.mxu0 0.0
    %237 = vmatpush1.msra.mxu0 %v177
    %238 = vmatprep.subr.mxu0 0.0
    %239 = vmatpush1.msra.mxu0 %v178
    %240 = vmatprep.subr.mxu0 0.0
    %241 = vmatpush1.msra.mxu0 %v179
    %242 = vmatprep.subr.mxu0 0.0
    %243 = vmatpush1.msra.mxu0 %v180
    %244 = vmatprep.subr.mxu0 0.0
    %245 = vmatpush1.msra.mxu0 %v181
    %246 = vmatprep.subr.mxu0 0.0
    %247 = vmatpush1.msra.mxu0 %v182
    %248 = vmatprep.subr.mxu0 0.0
    %249 = vmatpush1.msra.mxu0 %v183
    %250 = vmatprep.subr.mxu0 0.0
    %251 = vmatpush1.msra.mxu0 %v184
    %252 = vmatprep.subr.mxu0 0.0
    %253 = vmatpush1.msra.mxu0 %v185
    %254 = vmatprep.subr.mxu0 0.0
    %255 = vmatpush1.msra.mxu0 %v186
    %256 = vmatprep.subr.mxu0 0.0
    %257 = vmatpush1.msra.mxu0 %v187
    %258 = vmatprep.subr.mxu0 0.0
    %259 = vmatpush1.msra.mxu0 %v188
    %260 = vmatprep.mubr.f32.mxu0 %v156
    %261 = vmatmul.mubr.f32.gmra.mrb[0].mxu0 %v155
    %v262 = vpop.f32.mrb[0].mxu0
    %v263 = vadd.f32 %v194, %v262
    %v264 = vpop.f32.mrb[0].mxu0
    %265 = vdwg.mxu0
    %266 = vst [vmem:[#allocation5] sm:$0xff] %v263
    // Predicated region
    $region26: #{tpu_custom_call.1} parent=1 // pred_check
      _
    $region27: #{tpu_custom_call.1} parent=1 // pred_check_branch
      %268 = sbr.rel (0) target = $region29
    $region28: #{tpu_custom_call.1} parent=1 // pred_region
      %s270 = ssub.s32 128, 128
      %271 = vsyncadd [#allocation4], %s270
      %s273 = sshll.u32 [#allocation5], 4
      %s274 = int_to_ptr.vmem [resolvable:$true] %s273
      %276 = dma.vmem_to_hbm [thread:$0]  %s274, 128, %s5, [#allocation4]
    $region29: #{tpu_custom_call.1} parent=1 // pred_fallthru
      _
    // Predicated region
    $region30: #{tpu_custom_call.1} parent=1 // pred_check
      _
    $region31: #{tpu_custom_call.1} parent=1 // pred_check_branch
      %278 = sbr.rel (0) target = $region33
    $region32: #{tpu_custom_call.1} parent=1 // pred_region
      %279 = dma.done [#allocation4], 128
    $region33: #{tpu_custom_call.1} parent=1 // pred_fallthru
      _
    %280 = vsyncpa [#allocation3], 1
    %281 = vsyncpa [#allocation4], 1

</llo_original>
